<compile_context>
chip_gen: v6e
topology: v6e:2x2x1
jax: 0.10.0
libtpu: 0.0.40
codegen_flags: <defaults>
</compile_context>

<pallas_src>
import jax
import jax.numpy as jnp
from jax import lax
from jax.experimental import pallas as pl
from jax.experimental.pallas import tpu as pltpu

_LANES = 128
_TARGET_BLOCK_ROWS = 4096      # 2 MiB f32 per input block per grid step
_SMALL_NUMEL = 64 * 1024       # below this, plain XLA beats a kernel launch
_VMEM_LIMIT_BYTES = 32 * 1024 * 1024


def _detect_tensorcore_count():
    """Best-effort TensorCore-per-device count. Defaults to 1 (v5e/v6e)."""
    try:
        info = pltpu.get_tpu_info()
        for name in ("num_cores", "core_count", "num_tensorcores",
                     "tensorcore_count", "cores_per_chip", "num_cores_per_chip"):
            v = getattr(info, name, None)
            if isinstance(v, int) and v >= 1:
                return v
    except Exception:
        pass
    try:
        kind = jax.devices()[0].device_kind.lower()
        if "v7" in kind:        # v7x: 2 TensorCores per chip
            return 2
    except Exception:
        pass
    return 1


def _make_kernel(*, rows, block_rows, bpp, nb, needs_mask, two_d):
    """Per-lane partial-sum kernel; output (1,128) block is the accumulator."""

    def kernel(x_ref, y_ref, o_ref):
        if two_d:
            p = pl.program_id(0)
            i = pl.program_id(1)
            blk = p * bpp + i
        else:
            i = pl.program_id(0)
            blk = i

        @pl.when(i == 0)
        def _init():
            o_ref[...] = jnp.zeros_like(o_ref)

        d = x_ref[...].astype(jnp.float32) - y_ref[...].astype(jnp.float32)
        sq = d * d

        if not needs_mask:          # static Python bool — hot path, no masking
            o_ref[...] += jnp.sum(sq, axis=0, keepdims=True)
        else:
            row0 = blk * block_rows
            edge = row0 + block_rows > rows    # ragged last block or phantom step

            @pl.when(jnp.logical_not(edge))
            def _full_block():
                o_ref[...] += jnp.sum(sq, axis=0, keepdims=True)

            @pl.when(edge)
            def _edge_block():
                # jnp.where (select) does not propagate NaN/Inf from the
                # unselected branch, so garbage rows in the partial DMA are
                # safely zeroed.  Do NOT replace with multiplication by a mask.
                ridx = row0 + lax.broadcasted_iota(jnp.int32, sq.shape, 0)
                o_ref[...] += jnp.sum(jnp.where(ridx < rows, sq, 0.0),
                                      axis=0, keepdims=True)

    return kernel


def loss_func(logits, target):
    """Pallas equivalent of LossFunc.forward (MSELoss reduction='sum', then /2)."""
    assert logits.shape == target.shape, (logits.shape, target.shape)
    xf = logits.reshape(-1)
    yf = target.reshape(-1)
    n = xf.shape[0]

    # --- Small-input bypass: let XLA fuse the tiny reduction. ---------------
    if n < _SMALL_NUMEL:
        d = xf.astype(jnp.float32) - yf.astype(jnp.float32)
        return jnp.sum(d * d) * jnp.float32(0.5)

    # --- Lane alignment: handle a <128-element tail in the wrapper. ---------
    rem = n % _LANES
    tail = jnp.float32(0.0)
    if rem:
        dt = xf[n - rem:].astype(jnp.float32) - yf[n - rem:].astype(jnp.float32)
        tail = jnp.sum(dt * dt)
        xf = xf[: n - rem]
        yf = yf[: n - rem]

    x2d = xf.reshape(-1, _LANES)
    y2d = yf.reshape(-1, _LANES)
    rows = x2d.shape[0]

    # Block rows: full extent for small inputs (always a legal block), else a
    # large 2 MiB tile so DMA dominates the ~600-cycle per-step overhead.
    block_rows = rows if rows <= _TARGET_BLOCK_ROWS else _TARGET_BLOCK_ROWS
    nb = pl.cdiv(rows, block_rows)                  # real row blocks

    # Split across TensorCores only when the chip has >1 TC and there is
    # enough work to amortize the extra (possibly phantom) grid steps.
    cores = _detect_tensorcore_count()
    if cores >= 2 and nb >= 2 * cores:
        num_parallel = cores
        bpp = pl.cdiv(nb, num_parallel)             # blocks per core slice
    else:
        num_parallel = 1
        bpp = nb
    needs_mask = (nb * block_rows != rows) or (num_parallel * bpp != nb)

    if num_parallel > 1:
        grid = (num_parallel, bpp)
        # Clamp phantom trailing blocks onto the last real block; their rows
        # are masked to zero inside the kernel.
        in_map = lambda p, i: (jnp.minimum(p * bpp + i, nb - 1), 0)
        out_map = lambda p, i: (p, 0)
        dim_sem = (pltpu.CORE_PARALLEL, pltpu.ARBITRARY)
    else:
        grid = (bpp,)
        in_map = lambda i: (i, 0)
        out_map = lambda i: (0, 0)
        dim_sem = ("arbitrary",)

    kernel = _make_kernel(rows=rows, block_rows=block_rows, bpp=bpp, nb=nb,
                          needs_mask=needs_mask, two_d=(num_parallel > 1))

    # NOTE: if xprof shows inter-step DMA gaps at this block size, add
    # pipeline_mode=pl.Buffered(3) to the two input BlockSpecs.
    partials = pl.pallas_call(
        kernel,
        out_shape=jax.ShapeDtypeStruct((num_parallel, _LANES), jnp.float32),
        grid_spec=pltpu.PrefetchScalarGridSpec(
            num_scalar_prefetch=0,
            grid=grid,
            in_specs=[
                pl.BlockSpec((block_rows, _LANES), in_map),
                pl.BlockSpec((block_rows, _LANES), in_map),
            ],
            out_specs=pl.BlockSpec((1, _LANES), out_map),
        ),
        compiler_params=pltpu.CompilerParams(
            dimension_semantics=dim_sem,
            vmem_limit_bytes=_VMEM_LIMIT_BYTES,
        ),
    )(x2d, y2d)

    # Cross-lane reduce, tail, and the .div_(2) of the reference, all in XLA.
    return (jnp.sum(partials) + tail) * jnp.float32(0.5)


if __name__ == "__main__":
    key = jax.random.PRNGKey(0)

    def _check(shape, dtype=jnp.float32, rtol=1e-3, atol=1e-2):
        k = jax.random.fold_in(key, sum(shape))
        k1, k2 = jax.random.split(k)
        x = jax.random.normal(k1, shape, dtype=jnp.float32).astype(dtype)
        y = jax.random.normal(k2, shape, dtype=jnp.float32).astype(dtype)
        got = jax.block_until_ready(loss_func(x, y))
        ref = jnp.sum((x.astype(jnp.float32) - y.astype(jnp.float32)) ** 2) * 0.5
        assert jnp.allclose(got, ref, rtol=rtol, atol=atol), (shape, got, ref)

    # Primary: small NCHW shape consistent with a DnCNN denoiser forward pass
    # (goes through the XLA small-input bypass).
    _check((2, 4, 16, 16))
    # Pallas single-block path (rows <= 4096, 128-aligned numel).
    _check((4, 3, 128, 128))
    # Same path with bf16 inputs (streamed as bf16, widened in-kernel).
    _check((4, 3, 128, 128), dtype=jnp.bfloat16, rtol=5e-3, atol=1e-1)
    # Pallas tiled path: multiple 4096-row blocks with a ragged last block.
    _check((1, 1, 4104, 128))
    # Ragged-numel path: <128-element tail handled in the wrapper.
    _check((2, 3, 107, 107))

    print("KERNEL_OK")
</pallas_src>

<mosaic_0001>
module attributes {stable_mosaic.version = 11 : i64} {
  func.func @kernel(%arg0: i32, %arg1: memref<1536x128xf32, #tpu.memory_space<vmem>>, %arg2: memref<1536x128xf32, #tpu.memory_space<vmem>>, %arg3: memref<1x128xf32, #tpu.memory_space<vmem>>) attributes {dimension_semantics = [#tpu.dimension_semantics<arbitrary>], iteration_bounds = array<i64: 1>, scalar_prefetch = 0 : i64, scratch_operands = 0 : i64, tpu.core_type = #tpu.core_type<tc>, window_params = [{transform_indices = @transform_0, window_bounds = array<i64: 1536, 128>}, {transform_indices = @transform_1, window_bounds = array<i64: 1536, 128>}, {pipeline_mode = #tpu.pipeline_mode<synchronous>, transform_indices = @transform_2, window_bounds = array<i64: 1, 128>}]} {
    %c0_i32 = arith.constant 0 : i32
    %0 = arith.cmpi eq, %arg0, %c0_i32 : i32
    %1 = arith.extui %0 : i1 to i32
    %c0_i32_0 = arith.constant 0 : i32
    %2 = arith.cmpi ne, %1, %c0_i32_0 : i32
    scf.if %2 {
      %cst_8 = arith.constant 0.000000e+00 : f32
      %12 = vector.broadcast %cst_8 : f32 to vector<1x128xf32>
      %c0_9 = arith.constant 0 : index
      %c0_10 = arith.constant 0 : index
      %13 = vector.load %arg3[%c0_9, %c0_10] : memref<1x128xf32, #tpu.memory_space<vmem>>, vector<1x128xf32>
      tpu.vector_store %arg3[%c0_9, %c0_10], %12 {strides = array<i32>} : memref<1x128xf32, #tpu.memory_space<vmem>>, vector<1x128xf32>,
    } else {
    }
    %c0 = arith.constant 0 : index
    %c0_1 = arith.constant 0 : index
    %3 = vector.load %arg1[%c0, %c0_1] : memref<1536x128xf32, #tpu.memory_space<vmem>>, vector<1536x128xf32>
    %c0_2 = arith.constant 0 : index
    %c0_3 = arith.constant 0 : index
    %4 = vector.load %arg2[%c0_2, %c0_3] : memref<1536x128xf32, #tpu.memory_space<vmem>>, vector<1536x128xf32>
    %5 = arith.subf %3, %4 : vector<1536x128xf32>
    %6 = arith.mulf %5, %5 : vector<1536x128xf32>
    %c0_4 = arith.constant 0 : index
    %c0_5 = arith.constant 0 : index
    %7 = vector.load %arg3[%c0_4, %c0_5] : memref<1x128xf32, #tpu.memory_space<vmem>>, vector<1x128xf32>
    %cst = arith.constant dense<0.000000e+00> : vector<128xf32>
    %8 = vector.multi_reduction <add>, %6, %cst [0] : vector<1536x128xf32> to vector<128xf32>
    %9 = vector.shape_cast %8 : vector<128xf32> to vector<1x128xf32>
    %10 = arith.addf %7, %9 : vector<1x128xf32>
    %c0_6 = arith.constant 0 : index
    %c0_7 = arith.constant 0 : index
    %11 = vector.load %arg3[%c0_6, %c0_7] : memref<1x128xf32, #tpu.memory_space<vmem>>, vector<1x128xf32>
    tpu.vector_store %arg3[%c0_6, %c0_7], %10 {strides = array<i32>} : memref<1x128xf32, #tpu.memory_space<vmem>>, vector<1x128xf32>,
    return
  }
  func.func @transform_0(%arg0: i32) -> (i32, i32) {
    %c0_i32 = arith.constant 0 : i32
    %c0_i32_0 = arith.constant 0 : i32
    return %arg0, %c0_i32 : i32, i32
  }
  func.func @transform_1(%arg0: i32) -> (i32, i32) {
    %c0_i32 = arith.constant 0 : i32
    %c0_i32_0 = arith.constant 0 : i32
    return %arg0, %c0_i32 : i32, i32
  }
  func.func @transform_2(%arg0: i32) -> (i32, i32) {
    %c0_i32 = arith.constant 0 : i32
    %c0_i32_0 = arith.constant 0 : i32
    %c0_i32_1 = arith.constant 0 : i32
    return %c0_i32, %c0_i32_0 : i32, i32
  }
}

</mosaic_0001>

<llo_original>
// kernel: tpu_custom_call.1
$region0: #{tpu_custom_call.1}
  #allocation0 [shape = 'u32[]', space=smem, size = 0x4, offset = 0x4, fixed_abs, tag = 'smem constant byte address 0x4 - core index']
  #allocation1 [shape = 'u32[144,128]{1,0:T(1,128)}', space=vmem, size = 0x12000, scoped, tag = 'internal scratch']
  %s0 = inlined_call_operand.hbm [shape: f32[1536,128], index: 0, kind: input, shape index: {}]
  %s1 = inlined_call_operand.hbm [shape: f32[1536,128], index: 1, kind: input, shape index: {}]
  %s2 = inlined_call_operand.hbm [shape: f32[1,128], index: 2, kind: output, shape index: {}]
  %s3 = sld [smem:[#allocation0]]
  $region30: #{tpu_custom_call.1} parent=0
    _
  %s5 = ssub.s32 1, %s3
  %s6 = scalar_select 0, %s5, %s3
  $region1: #{tpu_custom_call.1} parent=0
    #allocation2 [shape = 'u8[786432]{0}', space=vmem, size = 0xc0000, scoped, tag = 'input window, operand 0, single buffered']
    #allocation3 [shape = 's32[1]{0}', space=sflag, size = 0x4, scoped, tag = 'scoped memory for tpu_custom_call.1']
    #allocation4 [shape = 's32[1]{0}', space=sflag, size = 0x4, scoped, tag = 'scoped memory for tpu_custom_call.1']
    #allocation5 [shape = 'u8[786432]{0}', space=vmem, size = 0xc0000, scoped, tag = 'input window, operand 1, single buffered']
    #allocation6 [shape = 's32[1]{0}', space=sflag, size = 0x4, scoped, tag = 'scoped memory for tpu_custom_call.1']
    #allocation7 [shape = 'u8[512]{0}', space=vmem, size = 0x400, scoped, tag = 'output window, operand 0, single buffered']
    %7 = vsyncpa [#allocation3], 0
    %8 = vsyncpa [#allocation6], 0
    %9 = vsyncpa [#allocation4], 0
    // Predicated region
    $region2: #{tpu_custom_call.1} parent=1 // pred_check
      _
    $region3: #{tpu_custom_call.1} parent=1 // pred_check_branch
      %11 = sbr.rel (0) target = $region5
    $region4: #{tpu_custom_call.1} parent=1 // pred_region
      %s13 = ssub.s32 24576, 24576
      %14 = vsyncadd [#allocation3], %s13
      %s15 = sshll.u32 [#allocation2], 4
      %s16 = int_to_ptr.vmem [resolvable:$true] %s15
      %21 = dma.hbm_to_vmem [thread:$0]  %s0, 24576, %s16, [#allocation3], 128, 128, 8
    $region5: #{tpu_custom_call.1} parent=1 // pred_fallthru
      _
    // Predicated region
    $region6: #{tpu_custom_call.1} parent=1 // pred_check
      _
    $region7: #{tpu_custom_call.1} parent=1 // pred_check_branch
      %23 = sbr.rel (0) target = $region9
    $region8: #{tpu_custom_call.1} parent=1 // pred_region
      %s25 = ssub.s32 24576, 24576
      %26 = vsyncadd [#allocation6], %s25
      %s27 = sshll.u32 [#allocation5], 4
      %s28 = int_to_ptr.vmem [resolvable:$true] %s27
      %33 = dma.hbm_to_vmem [thread:$0]  %s1, 24576, %s28, [#allocation6], 128, 128, 8
    $region9: #{tpu_custom_call.1} parent=1 // pred_fallthru
      _
    // Predicated region
    $region10: #{tpu_custom_call.1} parent=1 // pred_check
      _
    $region11: #{tpu_custom_call.1} parent=1 // pred_check_branch
      %35 = sbr.rel (0) target = $region13
    $region12: #{tpu_custom_call.1} parent=1 // pred_region
      %36 = dma.done [#allocation3], 24576
    $region13: #{tpu_custom_call.1} parent=1 // pred_fallthru
      _
    // Predicated region
    $region14: #{tpu_custom_call.1} parent=1 // pred_check
      _
    $region15: #{tpu_custom_call.1} parent=1 // pred_check_branch
      %38 = sbr.rel (0) target = $region17
    $region16: #{tpu_custom_call.1} parent=1 // pred_region
      %39 = dma.done [#allocation6], 24576
    $region17: #{tpu_custom_call.1} parent=1 // pred_fallthru
      _
    %p40 = scmp.eq.s32.totalorder 0, 0
    // Predicated region
    $region18: #{tpu_custom_call.1} parent=1 // pred_check
      %p41 = pneg %p40
    $region19: #{tpu_custom_call.1} parent=1 // pred_check_branch
      %43 = sbr.rel (%p41) target = $region21
    $region20: #{tpu_custom_call.1} parent=1 // pred_region
      %44 = vst [vmem:[#allocation7] sm:$0x1] 0.0
    $region21: #{tpu_custom_call.1} parent=1 // pred_fallthru
      _
    %v45 = vld [vmem:[#allocation2] sm:$0xff]
    %v46 = vld [vmem:[#allocation2 + $0x8] sm:$0xff]
    %v47 = vld [vmem:[#allocation2 + $0x10] sm:$0xff]
    %v48 = vld [vmem:[#allocation2 + $0x18] sm:$0xff]
    %v49 = vld [vmem:[#allocation2 + $0x20] sm:$0xff]
    %v50 = vld [vmem:[#allocation2 + $0x28] sm:$0xff]
    %v51 = vld [vmem:[#allocation2 + $0x30] sm:$0xff]
    %v52 = vld [vmem:[#allocation2 + $0x38] sm:$0xff]
    %v53 = vld [vmem:[#allocation2 + $0x40] sm:$0xff]
    %v54 = vld [vmem:[#allocation2 + $0x48] sm:$0xff]
    %v55 = vld [vmem:[#allocation2 + $0x50] sm:$0xff]
    %v56 = vld [vmem:[#allocation2 + $0x58] sm:$0xff]
    %v57 = vld [vmem:[#allocation2 + $0x60] sm:$0xff]
    %v58 = vld [vmem:[#allocation2 + $0x68] sm:$0xff]
    %v59 = vld [vmem:[#allocation2 + $0x70] sm:$0xff]
    %v60 = vld [vmem:[#allocation2 + $0x78] sm:$0xff]
    %v61 = vld [vmem:[#allocation2 + $0x80] sm:$0xff]
    %v62 = vld [vmem:[#allocation2 + $0x88] sm:$0xff]
    %v63 = vld [vmem:[#allocation2 + $0x90] sm:$0xff]
    %v64 = vld [vmem:[#allocation2 + $0x98] sm:$0xff]
    %v65 = vld [vmem:[#allocation2 + $0xa0] sm:$0xff]
    %v66 = vld [vmem:[#allocation2 + $0xa8] sm:$0xff]
    %v67 = vld [vmem:[#allocation2 + $0xb0] sm:$0xff]
    %v68 = vld [vmem:[#allocation2 + $0xb8] sm:$0xff]
    %v69 = vld [vmem:[#allocation2 + $0xc0] sm:$0xff]
    %v70 = vld [vmem:[#allocation2 + $0xc8] sm:$0xff]
    %v71 = vld [vmem:[#allocation2 + $0xd0] sm:$0xff]
    %v72 = vld [vmem:[#allocation2 + $0xd8] sm:$0xff]
    %v73 = vld [vmem:[#allocation2 + $0xe0] sm:$0xff]
    %v74 = vld [vmem:[#allocation2 + $0xe8] sm:$0xff]
    %v75 = vld [vmem:[#allocation2 + $0xf0] sm:$0xff]
    %v76 = vld [vmem:[#allocation2 + $0xf8] sm:$0xff]
    %v77 = vld [vmem:[#allocation2 + $0x100] sm:$0xff]
    %v78 = vld [vmem:[#allocation2 + $0x108] sm:$0xff]
    %v79 = vld [vmem:[#allocation2 + $0x110] sm:$0xff]
    %v80 = vld [vmem:[#allocation2 + $0x118] sm:$0xff]
    %v81 = vld [vmem:[#allocation2 + $0x120] sm:$0xff]
    %v82 = vld [vmem:[#allocation2 + $0x128] sm:$0xff]
    %v83 = vld [vmem:[#allocation2 + $0x130] sm:$0xff]
    %v84 = vld [vmem:[#allocation2 + $0x138] sm:$0xff]
    %v85 = vld [vmem:[#allocation2 + $0x140] sm:$0xff]
    %v86 = vld [vmem:[#allocation2 + $0x148] sm:$0xff]
    %v87 = vld [vmem:[#allocation2 + $0x150] sm:$0xff]
    %v88 = vld [vmem:[#allocation2 + $0x158] sm:$0xff]
    %v89 = vld [vmem:[#allocation2 + $0x160] sm:$0xff]
    %v90 = vld [vmem:[#allocation2 + $0x168] sm:$0xff]
    %v91 = vld [vmem:[#allocation2 + $0x170] sm:$0xff]
    %v92 = vld [vmem:[#allocation2 + $0x178] sm:$0xff]
    %v93 = vld [vmem:[#allocation2 + $0x180] sm:$0xff]
    %v94 = vld [vmem:[#allocation2 + $0x188] sm:$0xff]
    %v95 = vld [vmem:[#allocation2 + $0x190] sm:$0xff]
    %v96 = vld [vmem:[#allocation2 + $0x198] sm:$0xff]
    %v97 = vld [vmem:[#allocation2 + $0x1a0] sm:$0xff]
    %v98 = vld [vmem:[#allocation2 + $0x1a8] sm:$0xff]
    %v99 = vld [vmem:[#allocation2 + $0x1b0] sm:$0xff]
    %v100 = vld [vmem:[#allocation2 + $0x1b8] sm:$0xff]
    %v101 = vld [vmem:[#allocation2 + $0x1c0] sm:$0xff]
    %v102 = vld [vmem:[#allocation2 + $0x1c8] sm:$0xff]
    %v103 = vld [vmem:[#allocation2 + $0x1d0] sm:$0xff]
    %v104 = vld [vmem:[#allocation2 + $0x1d8] sm:$0xff]
    %v105 = vld [vmem:[#allocation2 + $0x1e0] sm:$0xff]
    %v106 = vld [vmem:[#allocation2 + $0x1e8] sm:$0xff]
    %v107 = vld [vmem:[#allocation2 + $0x1f0] sm:$0xff]
    %v108 = vld [vmem:[#allocation2 + $0x1f8] sm:$0xff]
    %v109 = vld [vmem:[#allocation2 + $0x200] sm:$0xff]
    %v110 = vld [vmem:[#allocation2 + $0x208] sm:$0xff]
    %v111 = vld [vmem:[#allocation2 + $0x210] sm:$0xff]
    %v112 = vld [vmem:[#allocation2 + $0x218] sm:$0xff]
    %v113 = vld [vmem:[#allocation2 + $0x220] sm:$0xff]
    %v114 = vld [vmem:[#allocation2 + $0x228] sm:$0xff]
    %v115 = vld [vmem:[#allocation2 + $0x230] sm:$0xff]
    %v116 = vld [vmem:[#allocation2 + $0x238] sm:$0xff]
    %v117 = vld [vmem:[#allocation2 + $0x240] sm:$0xff]
    %v118 = vld [vmem:[#allocation2 + $0x248] sm:$0xff]
    %v119 = vld [vmem:[#allocation2 + $0x250] sm:$0xff]
    %v120 = vld [vmem:[#allocation2 + $0x258] sm:$0xff]
    %v121 = vld [vmem:[#allocation2 + $0x260] sm:$0xff]
    %v122 = vld [vmem:[#allocation2 + $0x268] sm:$0xff]
    %v123 = vld [vmem:[#allocation2 + $0x270] sm:$0xff]
    %v124 = vld [vmem:[#allocation2 + $0x278] sm:$0xff]
    %v125 = vld [vmem:[#allocation2 + $0x280] sm:$0xff]
    %v126 = vld [vmem:[#allocation2 + $0x288] sm:$0xff]
    %v127 = vld [vmem:[#allocation2 + $0x290] sm:$0xff]
    %v128 = vld [vmem:[#allocation2 + $0x298] sm:$0xff]
    %v129 = vld [vmem:[#allocation2 + $0x2a0] sm:$0xff]
    %v130 = vld [vmem:[#allocation2 + $0x2a8] sm:$0xff]
    %v131 = vld [vmem:[#allocation2 + $0x2b0] sm:$0xff]
    %v132 = vld [vmem:[#allocation2 + $0x2b8] sm:$0xff]
    %v133 = vld [vmem:[#allocation2 + $0x2c0] sm:$0xff]
    %v134 = vld [vmem:[#allocation2 + $0x2c8] sm:$0xff]
    %v135 = vld [vmem:[#allocation2 + $0x2d0] sm:$0xff]
    %v136 = vld [vmem:[#allocation2 + $0x2d8] sm:$0xff]
    %v137 = vld [vmem:[#allocation2 + $0x2e0] sm:$0xff]
    %v138 = vld [vmem:[#allocation2 + $0x2e8] sm:$0xff]
    %v139 = vld [vmem:[#allocation2 + $0x2f0] sm:$0xff]
    %v140 = vld [vmem:[#allocation2 + $0x2f8] sm:$0xff]
    %v141 = vld [vmem:[#allocation2 + $0x300] sm:$0xff]
    %v142 = vld [vmem:[#allocation2 + $0x308] sm:$0xff]
    %v143 = vld [vmem:[#allocation2 + $0x310] sm:$0xff]
    %v144 = vld [vmem:[#allocation2 + $0x318] sm:$0xff]
    %v145 = vld [vmem:[#allocation2 + $0x320] sm:$0xff]
    %v146 = vld [vmem:[#allocation2 + $0x328] sm:$0xff]
    %v147 = vld [vmem:[#allocation2 + $0x330] sm:$0xff]
    %v148 = vld [vmem:[#allocation2 + $0x338] sm:$0xff]
    %v149 = vld [vmem:[#allocation2 + $0x340] sm:$0xff]
    %v150 = vld [vmem:[#allocation2 + $0x348] sm:$0xff]
    %v151 = vld [vmem:[#allocation2 + $0x350] sm:$0xff]
    %v152 = vld [vmem:[#allocation2 + $0x358] sm:$0xff]
    %v153 = vld [vmem:[#allocation2 + $0x360] sm:$0xff]
    %v154 = vld [vmem:[#allocation2 + $0x368] sm:$0xff]
    %v155 = vld [vmem:[#allocation2 + $0x370] sm:$0xff]
    %v156 = vld [vmem:[#allocation2 + $0x378] sm:$0xff]
    %v157 = vld [vmem:[#allocation2 + $0x380] sm:$0xff]
    %v158 = vld [vmem:[#allocation2 + $0x388] sm:$0xff]
    %v159 = vld [vmem:[#allocation2 + $0x390] sm:$0xff]
    %v160 = vld [vmem:[#allocation2 + $0x398] sm:$0xff]
    %v161 = vld [vmem:[#allocation2 + $0x3a0] sm:$0xff]
    %v162 = vld [vmem:[#allocation2 + $0x3a8] sm:$0xff]
    %v163 = vld [vmem:[#allocation2 + $0x3b0] sm:$0xff]
    %v164 = vld [vmem:[#allocation2 + $0x3b8] sm:$0xff]
    %v165 = vld [vmem:[#allocation2 + $0x3c0] sm:$0xff]
    %v166 = vld [vmem:[#allocation2 + $0x3c8] sm:$0xff]
    %v167 = vld [vmem:[#allocation2 + $0x3d0] sm:$0xff]
    %v168 = vld [vmem:[#allocation2 + $0x3d8] sm:$0xff]
    %v169 = vld [vmem:[#allocation2 + $0x3e0] sm:$0xff]
    %v170 = vld [vmem:[#allocation2 + $0x3e8] sm:$0xff]
    %v171 = vld [vmem:[#allocation2 + $0x3f0] sm:$0xff]
    %v172 = vld [vmem:[#allocation2 + $0x3f8] sm:$0xff]
    %v173 = vld [vmem:[#allocation2 + $0x400] sm:$0xff]
    %v174 = vld [vmem:[#allocation2 + $0x408] sm:$0xff]
    %v175 = vld [vmem:[#allocation2 + $0x410] sm:$0xff]
    %v176 = vld [vmem:[#allocation2 + $0x418] sm:$0xff]
    %v177 = vld [vmem:[#allocation2 + $0x420] sm:$0xff]
    %v178 = vld [vmem:[#allocation2 + $0x428] sm:$0xff]
    %v179 = vld [vmem:[#allocation2 + $0x430] sm:$0xff]
    %v180 = vld [vmem:[#allocation2 + $0x438] sm:$0xff]
    %v181 = vld [vmem:[#allocation2 + $0x440] sm:$0xff]
    %v182 = vld [vmem:[#allocation2 + $0x448] sm:$0xff]
    %v183 = vld [vmem:[#allocation2 + $0x450] sm:$0xff]
    %v184 = vld [vmem:[#allocation2 + $0x458] sm:$0xff]
    %v185 = vld [vmem:[#allocation2 + $0x460] sm:$0xff]
    %v186 = vld [vmem:[#allocation2 + $0x468] sm:$0xff]
    %v187 = vld [vmem:[#allocation2 + $0x470] sm:$0xff]
    %v188 = vld [vmem:[#allocation2 + $0x478] sm:$0xff]
    %v189 = vld [vmem:[#allocation2 + $0x480] sm:$0xff]
    %v190 = vld [vmem:[#allocation2 + $0x488] sm:$0xff]
    %v191 = vld [vmem:[#allocation2 + $0x490] sm:$0xff]
    %v192 = vld [vmem:[#allocation2 + $0x498] sm:$0xff]
    %v193 = vld [vmem:[#allocation2 + $0x4a0] sm:$0xff]
    %v194 = vld [vmem:[#allocation2 + $0x4a8] sm:$0xff]
    %v195 = vld [vmem:[#allocation2 + $0x4b0] sm:$0xff]
    %v196 = vld [vmem:[#allocation2 + $0x4b8] sm:$0xff]
    %v197 = vld [vmem:[#allocation2 + $0x4c0] sm:$0xff]
    %v198 = vld [vmem:[#allocation2 + $0x4c8] sm:$0xff]
    %v199 = vld [vmem:[#allocation2 + $0x4d0] sm:$0xff]
    %v200 = vld [vmem:[#allocation2 + $0x4d8] sm:$0xff]
    %v201 = vld [vmem:[#allocation2 + $0x4e0] sm:$0xff]
    %v202 = vld [vmem:[#allocation2 + $0x4e8] sm:$0xff]
    %v203 = vld [vmem:[#allocation2 + $0x4f0] sm:$0xff]
    %v204 = vld [vmem:[#allocation2 + $0x4f8] sm:$0xff]
    %v205 = vld [vmem:[#allocation2 + $0x500] sm:$0xff]
    %v206 = vld [vmem:[#allocation2 + $0x508] sm:$0xff]
    %v207 = vld [vmem:[#allocation2 + $0x510] sm:$0xff]
    %v208 = vld [vmem:[#allocation2 + $0x518] sm:$0xff]
    %v209 = vld [vmem:[#allocation2 + $0x520] sm:$0xff]
    %v210 = vld [vmem:[#allocation2 + $0x528] sm:$0xff]
    %v211 = vld [vmem:[#allocation2 + $0x530] sm:$0xff]
    %v212 = vld [vmem:[#allocation2 + $0x538] sm:$0xff]
    %v213 = vld [vmem:[#allocation2 + $0x540] sm:$0xff]
    %v214 = vld [vmem:[#allocation2 + $0x548] sm:$0xff]
    %v215 = vld [vmem:[#allocation2 + $0x550] sm:$0xff]
    %v216 = vld [vmem:[#allocation2 + $0x558] sm:$0xff]
    %v217 = vld [vmem:[#allocation2 + $0x560] sm:$0xff]
    %v218 = vld [vmem:[#allocation2 + $0x568] sm:$0xff]
    %v219 = vld [vmem:[#allocation2 + $0x570] sm:$0xff]
    %v220 = vld [vmem:[#allocation2 + $0x578] sm:$0xff]
    %v221 = vld [vmem:[#allocation2 + $0x580] sm:$0xff]
    %v222 = vld [vmem:[#allocation2 + $0x588] sm:$0xff]
    %v223 = vld [vmem:[#allocation2 + $0x590] sm:$0xff]
    %v224 = vld [vmem:[#allocation2 + $0x598] sm:$0xff]
    %v225 = vld [vmem:[#allocation2 + $0x5a0] sm:$0xff]
    %v226 = vld [vmem:[#allocation2 + $0x5a8] sm:$0xff]
    %v227 = vld [vmem:[#allocation2 + $0x5b0] sm:$0xff]
    %v228 = vld [vmem:[#allocation2 + $0x5b8] sm:$0xff]
    %v229 = vld [vmem:[#allocation2 + $0x5c0] sm:$0xff]
    %v230 = vld [vmem:[#allocation2 + $0x5c8] sm:$0xff]
    %v231 = vld [vmem:[#allocation2 + $0x5d0] sm:$0xff]
    %v232 = vld [vmem:[#allocation2 + $0x5d8] sm:$0xff]
    %v233 = vld [vmem:[#allocation2 + $0x5e0] sm:$0xff]
    %v234 = vld [vmem:[#allocation2 + $0x5e8] sm:$0xff]
    %v235 = vld [vmem:[#allocation2 + $0x5f0] sm:$0xff]
    %v236 = vld [vmem:[#allocation2 + $0x5f8] sm:$0xff]
    %v237 = vld [vmem:[#allocation5] sm:$0xff]
    %v238 = vld [vmem:[#allocation5 + $0x8] sm:$0xff]
    %v239 = vld [vmem:[#allocation5 + $0x10] sm:$0xff]
    %v240 = vld [vmem:[#allocation5 + $0x18] sm:$0xff]
    %v241 = vld [vmem:[#allocation5 + $0x20] sm:$0xff]
    %v242 = vld [vmem:[#allocation5 + $0x28] sm:$0xff]
    %v243 = vld [vmem:[#allocation5 + $0x30] sm:$0xff]
    %v244 = vld [vmem:[#allocation5 + $0x38] sm:$0xff]
    %v245 = vld [vmem:[#allocation5 + $0x40] sm:$0xff]
    %v246 = vld [vmem:[#allocation5 + $0x48] sm:$0xff]
    %v247 = vld [vmem:[#allocation5 + $0x50] sm:$0xff]
    %v248 = vld [vmem:[#allocation5 + $0x58] sm:$0xff]
    %v249 = vld [vmem:[#allocation5 + $0x60] sm:$0xff]
    %v250 = vld [vmem:[#allocation5 + $0x68] sm:$0xff]
    %v251 = vld [vmem:[#allocation5 + $0x70] sm:$0xff]
    %v252 = vld [vmem:[#allocation5 + $0x78] sm:$0xff]
    %v253 = vld [vmem:[#allocation5 + $0x80] sm:$0xff]
    %v254 = vld [vmem:[#allocation5 + $0x88] sm:$0xff]
    %v255 = vld [vmem:[#allocation5 + $0x90] sm:$0xff]
    %v256 = vld [vmem:[#allocation5 + $0x98] sm:$0xff]
    %v257 = vld [vmem:[#allocation5 + $0xa0] sm:$0xff]
    %v258 = vld [vmem:[#allocation5 + $0xa8] sm:$0xff]
    %v259 = vld [vmem:[#allocation5 + $0xb0] sm:$0xff]
    %v260 = vld [vmem:[#allocation5 + $0xb8] sm:$0xff]
    %v261 = vld [vmem:[#allocation5 + $0xc0] sm:$0xff]
    %v262 = vld [vmem:[#allocation5 + $0xc8] sm:$0xff]
    %v263 = vld [vmem:[#allocation5 + $0xd0] sm:$0xff]
    %v264 = vld [vmem:[#allocation5 + $0xd8] sm:$0xff]
    %v265 = vld [vmem:[#allocation5 + $0xe0] sm:$0xff]
    %v266 = vld [vmem:[#allocation5 + $0xe8] sm:$0xff]
    %v267 = vld [vmem:[#allocation5 + $0xf0] sm:$0xff]
    %v268 = vld [vmem:[#allocation5 + $0xf8] sm:$0xff]
    %v269 = vld [vmem:[#allocation5 + $0x100] sm:$0xff]
    %v270 = vld [vmem:[#allocation5 + $0x108] sm:$0xff]
    %v271 = vld [vmem:[#allocation5 + $0x110] sm:$0xff]
    %v272 = vld [vmem:[#allocation5 + $0x118] sm:$0xff]
    %v273 = vld [vmem:[#allocation5 + $0x120] sm:$0xff]
    %v274 = vld [vmem:[#allocation5 + $0x128] sm:$0xff]
    %v275 = vld [vmem:[#allocation5 + $0x130] sm:$0xff]
    %v276 = vld [vmem:[#allocation5 + $0x138] sm:$0xff]
    %v277 = vld [vmem:[#allocation5 + $0x140] sm:$0xff]
    %v278 = vld [vmem:[#allocation5 + $0x148] sm:$0xff]
    %v279 = vld [vmem:[#allocation5 + $0x150] sm:$0xff]
    %v280 = vld [vmem:[#allocation5 + $0x158] sm:$0xff]
    %v281 = vld [vmem:[#allocation5 + $0x160] sm:$0xff]
    %v282 = vld [vmem:[#allocation5 + $0x168] sm:$0xff]
    %v283 = vld [vmem:[#allocation5 + $0x170] sm:$0xff]
    %v284 = vld [vmem:[#allocation5 + $0x178] sm:$0xff]
    %v285 = vld [vmem:[#allocation5 + $0x180] sm:$0xff]
    %v286 = vld [vmem:[#allocation5 + $0x188] sm:$0xff]
    %v287 = vld [vmem:[#allocation5 + $0x190] sm:$0xff]
    %v288 = vld [vmem:[#allocation5 + $0x198] sm:$0xff]
    %v289 = vld [vmem:[#allocation5 + $0x1a0] sm:$0xff]
    %v290 = vld [vmem:[#allocation5 + $0x1a8] sm:$0xff]
    %v291 = vld [vmem:[#allocation5 + $0x1b0] sm:$0xff]
    %v292 = vld [vmem:[#allocation5 + $0x1b8] sm:$0xff]
    %v293 = vld [vmem:[#allocation5 + $0x1c0] sm:$0xff]
    %v294 = vld [vmem:[#allocation5 + $0x1c8] sm:$0xff]
    %v295 = vld [vmem:[#allocation5 + $0x1d0] sm:$0xff]
    %v296 = vld [vmem:[#allocation5 + $0x1d8] sm:$0xff]
    %v297 = vld [vmem:[#allocation5 + $0x1e0] sm:$0xff]
    %v298 = vld [vmem:[#allocation5 + $0x1e8] sm:$0xff]
    %v299 = vld [vmem:[#allocation5 + $0x1f0] sm:$0xff]
    %v300 = vld [vmem:[#allocation5 + $0x1f8] sm:$0xff]
    %v301 = vld [vmem:[#allocation5 + $0x200] sm:$0xff]
    %v302 = vld [vmem:[#allocation5 + $0x208] sm:$0xff]
    %v303 = vld [vmem:[#allocation5 + $0x210] sm:$0xff]
    %v304 = vld [vmem:[#allocation5 + $0x218] sm:$0xff]
    %v305 = vld [vmem:[#allocation5 + $0x220] sm:$0xff]
    %v306 = vld [vmem:[#allocation5 + $0x228] sm:$0xff]
    %v307 = vld [vmem:[#allocation5 + $0x230] sm:$0xff]
    %v308 = vld [vmem:[#allocation5 + $0x238] sm:$0xff]
    %v309 = vld [vmem:[#allocation5 + $0x240] sm:$0xff]
    %v310 = vld [vmem:[#allocation5 + $0x248] sm:$0xff]
    %v311 = vld [vmem:[#allocation5 + $0x250] sm:$0xff]
    %v312 = vld [vmem:[#allocation5 + $0x258] sm:$0xff]
    %v313 = vld [vmem:[#allocation5 + $0x260] sm:$0xff]
    %v314 = vld [vmem:[#allocation5 + $0x268] sm:$0xff]
    %v315 = vld [vmem:[#allocation5 + $0x270] sm:$0xff]
    %v316 = vld [vmem:[#allocation5 + $0x278] sm:$0xff]
    %v317 = vld [vmem:[#allocation5 + $0x280] sm:$0xff]
    %v318 = vld [vmem:[#allocation5 + $0x288] sm:$0xff]
    %v319 = vld [vmem:[#allocation5 + $0x290] sm:$0xff]
    %v320 = vld [vmem:[#allocation5 + $0x298] sm:$0xff]
    %v321 = vld [vmem:[#allocation5 + $0x2a0] sm:$0xff]
    %v322 = vld [vmem:[#allocation5 + $0x2a8] sm:$0xff]
    %v323 = vld [vmem:[#allocation5 + $0x2b0] sm:$0xff]
    %v324 = vld [vmem:[#allocation5 + $0x2b8] sm:$0xff]
    %v325 = vld [vmem:[#allocation5 + $0x2c0] sm:$0xff]
    %v326 = vld [vmem:[#allocation5 + $0x2c8] sm:$0xff]
    %v327 = vld [vmem:[#allocation5 + $0x2d0] sm:$0xff]
    %v328 = vld [vmem:[#allocation5 + $0x2d8] sm:$0xff]
    %v329 = vld [vmem:[#allocation5 + $0x2e0] sm:$0xff]
    %v330 = vld [vmem:[#allocation5 + $0x2e8] sm:$0xff]
    %v331 = vld [vmem:[#allocation5 + $0x2f0] sm:$0xff]
    %v332 = vld [vmem:[#allocation5 + $0x2f8] sm:$0xff]
    %v333 = vld [vmem:[#allocation5 + $0x300] sm:$0xff]
    %v334 = vld [vmem:[#allocation5 + $0x308] sm:$0xff]
    %v335 = vld [vmem:[#allocation5 + $0x310] sm:$0xff]
    %v336 = vld [vmem:[#allocation5 + $0x318] sm:$0xff]
    %v337 = vld [vmem:[#allocation5 + $0x320] sm:$0xff]
    %v338 = vld [vmem:[#allocation5 + $0x328] sm:$0xff]
    %v339 = vld [vmem:[#allocation5 + $0x330] sm:$0xff]
    %v340 = vld [vmem:[#allocation5 + $0x338] sm:$0xff]
    %v341 = vld [vmem:[#allocation5 + $0x340] sm:$0xff]
    %v342 = vld [vmem:[#allocation5 + $0x348] sm:$0xff]
    %v343 = vld [vmem:[#allocation5 + $0x350] sm:$0xff]
    %v344 = vld [vmem:[#allocation5 + $0x358] sm:$0xff]
    %v345 = vld [vmem:[#allocation5 + $0x360] sm:$0xff]
    %v346 = vld [vmem:[#allocation5 + $0x368] sm:$0xff]
    %v347 = vld [vmem:[#allocation5 + $0x370] sm:$0xff]
    %v348 = vld [vmem:[#allocation5 + $0x378] sm:$0xff]
    %v349 = vld [vmem:[#allocation5 + $0x380] sm:$0xff]
    %v350 = vld [vmem:[#allocation5 + $0x388] sm:$0xff]
    %v351 = vld [vmem:[#allocation5 + $0x390] sm:$0xff]
    %v352 = vld [vmem:[#allocation5 + $0x398] sm:$0xff]
    %v353 = vld [vmem:[#allocation5 + $0x3a0] sm:$0xff]
    %v354 = vld [vmem:[#allocation5 + $0x3a8] sm:$0xff]
    %v355 = vld [vmem:[#allocation5 + $0x3b0] sm:$0xff]
    %v356 = vld [vmem:[#allocation5 + $0x3b8] sm:$0xff]
    %v357 = vld [vmem:[#allocation5 + $0x3c0] sm:$0xff]
    %v358 = vld [vmem:[#allocation5 + $0x3c8] sm:$0xff]
    %v359 = vld [vmem:[#allocation5 + $0x3d0] sm:$0xff]
    %v360 = vld [vmem:[#allocation5 + $0x3d8] sm:$0xff]
    %v361 = vld [vmem:[#allocation5 + $0x3e0] sm:$0xff]
    %v362 = vld [vmem:[#allocation5 + $0x3e8] sm:$0xff]
    %v363 = vld [vmem:[#allocation5 + $0x3f0] sm:$0xff]
    %v364 = vld [vmem:[#allocation5 + $0x3f8] sm:$0xff]
    %v365 = vld [vmem:[#allocation5 + $0x400] sm:$0xff]
    %v366 = vld [vmem:[#allocation5 + $0x408] sm:$0xff]
    %v367 = vld [vmem:[#allocation5 + $0x410] sm:$0xff]
    %v368 = vld [vmem:[#allocation5 + $0x418] sm:$0xff]
    %v369 = vld [vmem:[#allocation5 + $0x420] sm:$0xff]
    %v370 = vld [vmem:[#allocation5 + $0x428] sm:$0xff]
    %v371 = vld [vmem:[#allocation5 + $0x430] sm:$0xff]
    %v372 = vld [vmem:[#allocation5 + $0x438] sm:$0xff]
    %v373 = vld [vmem:[#allocation5 + $0x440] sm:$0xff]
    %v374 = vld [vmem:[#allocation5 + $0x448] sm:$0xff]
    %v375 = vld [vmem:[#allocation5 + $0x450] sm:$0xff]
    %v376 = vld [vmem:[#allocation5 + $0x458] sm:$0xff]
    %v377 = vld [vmem:[#allocation5 + $0x460] sm:$0xff]
    %v378 = vld [vmem:[#allocation5 + $0x468] sm:$0xff]
    %v379 = vld [vmem:[#allocation5 + $0x470] sm:$0xff]
    %v380 = vld [vmem:[#allocation5 + $0x478] sm:$0xff]
    %v381 = vld [vmem:[#allocation5 + $0x480] sm:$0xff]
    %v382 = vld [vmem:[#allocation5 + $0x488] sm:$0xff]
    %v383 = vld [vmem:[#allocation5 + $0x490] sm:$0xff]
    %v384 = vld [vmem:[#allocation5 + $0x498] sm:$0xff]
    %v385 = vld [vmem:[#allocation5 + $0x4a0] sm:$0xff]
    %v386 = vld [vmem:[#allocation5 + $0x4a8] sm:$0xff]
    %v387 = vld [vmem:[#allocation5 + $0x4b0] sm:$0xff]
    %v388 = vld [vmem:[#allocation5 + $0x4b8] sm:$0xff]
    %v389 = vld [vmem:[#allocation5 + $0x4c0] sm:$0xff]
    %v390 = vld [vmem:[#allocation5 + $0x4c8] sm:$0xff]
    %v391 = vld [vmem:[#allocation5 + $0x4d0] sm:$0xff]
    %v392 = vld [vmem:[#allocation5 + $0x4d8] sm:$0xff]
    %v393 = vld [vmem:[#allocation5 + $0x4e0] sm:$0xff]
    %v394 = vld [vmem:[#allocation5 + $0x4e8] sm:$0xff]
    %v395 = vld [vmem:[#allocation5 + $0x4f0] sm:$0xff]
    %v396 = vld [vmem:[#allocation5 + $0x4f8] sm:$0xff]
    %v397 = vld [vmem:[#allocation5 + $0x500] sm:$0xff]
    %v398 = vld [vmem:[#allocation5 + $0x508] sm:$0xff]
    %v399 = vld [vmem:[#allocation5 + $0x510] sm:$0xff]
    %v400 = vld [vmem:[#allocation5 + $0x518] sm:$0xff]
    %v401 = vld [vmem:[#allocation5 + $0x520] sm:$0xff]
    %v402 = vld [vmem:[#allocation5 + $0x528] sm:$0xff]
    %v403 = vld [vmem:[#allocation5 + $0x530] sm:$0xff]
    %v404 = vld [vmem:[#allocation5 + $0x538] sm:$0xff]
    %v405 = vld [vmem:[#allocation5 + $0x540] sm:$0xff]
    %v406 = vld [vmem:[#allocation5 + $0x548] sm:$0xff]
    %v407 = vld [vmem:[#allocation5 + $0x550] sm:$0xff]
    %v408 = vld [vmem:[#allocation5 + $0x558] sm:$0xff]
    %v409 = vld [vmem:[#allocation5 + $0x560] sm:$0xff]
    %v410 = vld [vmem:[#allocation5 + $0x568] sm:$0xff]
    %v411 = vld [vmem:[#allocation5 + $0x570] sm:$0xff]
    %v412 = vld [vmem:[#allocation5 + $0x578] sm:$0xff]
    %v413 = vld [vmem:[#allocation5 + $0x580] sm:$0xff]
    %v414 = vld [vmem:[#allocation5 + $0x588] sm:$0xff]
    %v415 = vld [vmem:[#allocation5 + $0x590] sm:$0xff]
    %v416 = vld [vmem:[#allocation5 + $0x598] sm:$0xff]
    %v417 = vld [vmem:[#allocation5 + $0x5a0] sm:$0xff]
    %v418 = vld [vmem:[#allocation5 + $0x5a8] sm:$0xff]
    %v419 = vld [vmem:[#allocation5 + $0x5b0] sm:$0xff]
    %v420 = vld [vmem:[#allocation5 + $0x5b8] sm:$0xff]
    %v421 = vld [vmem:[#allocation5 + $0x5c0] sm:$0xff]
    %v422 = vld [vmem:[#allocation5 + $0x5c8] sm:$0xff]
    %v423 = vld [vmem:[#allocation5 + $0x5d0] sm:$0xff]
    %v424 = vld [vmem:[#allocation5 + $0x5d8] sm:$0xff]
    %v425 = vld [vmem:[#allocation5 + $0x5e0] sm:$0xff]
    %v426 = vld [vmem:[#allocation5 + $0x5e8] sm:$0xff]
    %v427 = vld [vmem:[#allocation5 + $0x5f0] sm:$0xff]
    %v428 = vld [vmem:[#allocation5 + $0x5f8] sm:$0xff]
    %v429 = vsub.f32 %v45, %v237
    %v430 = vsub.f32 %v46, %v238
    %v431 = vsub.f32 %v47, %v239
    %v432 = vsub.f32 %v48, %v240
    %v433 = vsub.f32 %v49, %v241
    %v434 = vsub.f32 %v50, %v242
    %v435 = vsub.f32 %v51, %v243
    %v436 = vsub.f32 %v52, %v244
    %v437 = vsub.f32 %v53, %v245
    %v438 = vsub.f32 %v54, %v246
    %v439 = vsub.f32 %v55, %v247
    %v440 = vsub.f32 %v56, %v248
    %v441 = vsub.f32 %v57, %v249
    %v442 = vsub.f32 %v58, %v250
    %v443 = vsub.f32 %v59, %v251
    %v444 = vsub.f32 %v60, %v252
    %v445 = vsub.f32 %v61, %v253
    %v446 = vsub.f32 %v62, %v254
    %v447 = vsub.f32 %v63, %v255
    %v448 = vsub.f32 %v64, %v256
    %v449 = vsub.f32 %v65, %v257
    %v450 = vsub.f32 %v66, %v258
    %v451 = vsub.f32 %v67, %v259
    %v452 = vsub.f32 %v68, %v260
    %v453 = vsub.f32 %v69, %v261
    %v454 = vsub.f32 %v70, %v262
    %v455 = vsub.f32 %v71, %v263
    %v456 = vsub.f32 %v72, %v264
    %v457 = vsub.f32 %v73, %v265
    %v458 = vsub.f32 %v74, %v266
    %v459 = vsub.f32 %v75, %v267
    %v460 = vsub.f32 %v76, %v268
    %v461 = vsub.f32 %v77, %v269
    %v462 = vsub.f32 %v78, %v270
    %v463 = vsub.f32 %v79, %v271
    %v464 = vsub.f32 %v80, %v272
    %v465 = vsub.f32 %v81, %v273
    %v466 = vsub.f32 %v82, %v274
    %v467 = vsub.f32 %v83, %v275
    %v468 = vsub.f32 %v84, %v276
    %v469 = vsub.f32 %v85, %v277
    %v470 = vsub.f32 %v86, %v278
    %v471 = vsub.f32 %v87, %v279
    %v472 = vsub.f32 %v88, %v280
    %v473 = vsub.f32 %v89, %v281
    %v474 = vsub.f32 %v90, %v282
    %v475 = vsub.f32 %v91, %v283
    %v476 = vsub.f32 %v92, %v284
    %v477 = vsub.f32 %v93, %v285
    %v478 = vsub.f32 %v94, %v286
    %v479 = vsub.f32 %v95, %v287
    %v480 = vsub.f32 %v96, %v288
    %v481 = vsub.f32 %v97, %v289
    %v482 = vsub.f32 %v98, %v290
    %v483 = vsub.f32 %v99, %v291
    %v484 = vsub.f32 %v100, %v292
    %v485 = vsub.f32 %v101, %v293
    %v486 = vsub.f32 %v102, %v294
    %v487 = vsub.f32 %v103, %v295
    %v488 = vsub.f32 %v104, %v296
    %v489 = vsub.f32 %v105, %v297
    %v490 = vsub.f32 %v106, %v298
    %v491 = vsub.f32 %v107, %v299
    %v492 = vsub.f32 %v108, %v300
    %v493 = vsub.f32 %v109, %v301
    %v494 = vsub.f32 %v110, %v302
    %v495 = vsub.f32 %v111, %v303
    %v496 = vsub.f32 %v112, %v304
    %v497 = vsub.f32 %v113, %v305
    %v498 = vsub.f32 %v114, %v306
    %v499 = vsub.f32 %v115, %v307
    %v500 = vsub.f32 %v116, %v308
    %v501 = vsub.f32 %v117, %v309
    %v502 = vsub.f32 %v118, %v310
    %v503 = vsub.f32 %v119, %v311
    %v504 = vsub.f32 %v120, %v312
    %v505 = vsub.f32 %v121, %v313
    %v506 = vsub.f32 %v122, %v314
    %v507 = vsub.f32 %v123, %v315
    %v508 = vsub.f32 %v124, %v316
    %v509 = vsub.f32 %v125, %v317
    %v510 = vsub.f32 %v126, %v318
    %v511 = vsub.f32 %v127, %v319
    %v512 = vsub.f32 %v128, %v320
    %v513 = vsub.f32 %v129, %v321
    %v514 = vsub.f32 %v130, %v322
    %v515 = vsub.f32 %v131, %v323
    %v516 = vsub.f32 %v132, %v324
    %v517 = vsub.f32 %v133, %v325
    %v518 = vsub.f32 %v134, %v326
    %v519 = vsub.f32 %v135, %v327
    %v520 = vsub.f32 %v136, %v328
    %v521 = vsub.f32 %v137, %v329
    %v522 = vsub.f32 %v138, %v330
    %v523 = vsub.f32 %v139, %v331
    %v524 = vsub.f32 %v140, %v332
    %v525 = vsub.f32 %v141, %v333
    %v526 = vsub.f32 %v142, %v334
    %v527 = vsub.f32 %v143, %v335
    %v528 = vsub.f32 %v144, %v336
    %v529 = vsub.f32 %v145, %v337
    %v530 = vsub.f32 %v146, %v338
    %v531 = vsub.f32 %v147, %v339
    %v532 = vsub.f32 %v148, %v340
    %v533 = vsub.f32 %v149, %v341
    %v534 = vsub.f32 %v150, %v342
    %v535 = vsub.f32 %v151, %v343
    %v536 = vsub.f32 %v152, %v344
    %v537 = vsub.f32 %v153, %v345
    %v538 = vsub.f32 %v154, %v346
    %v539 = vsub.f32 %v155, %v347
    %v540 = vsub.f32 %v156, %v348
    %v541 = vsub.f32 %v157, %v349
    %v542 = vsub.f32 %v158, %v350
    %v543 = vsub.f32 %v159, %v351
    %v544 = vsub.f32 %v160, %v352
    %v545 = vsub.f32 %v161, %v353
    %v546 = vsub.f32 %v162, %v354
    %v547 = vsub.f32 %v163, %v355
    %v548 = vsub.f32 %v164, %v356
    %v549 = vsub.f32 %v165, %v357
    %v550 = vsub.f32 %v166, %v358
    %v551 = vsub.f32 %v167, %v359
    %v552 = vsub.f32 %v168, %v360
    %v553 = vsub.f32 %v169, %v361
    %v554 = vsub.f32 %v170, %v362
    %v555 = vsub.f32 %v171, %v363
    %v556 = vsub.f32 %v172, %v364
    %v557 = vsub.f32 %v173, %v365
    %v558 = vsub.f32 %v174, %v366
    %v559 = vsub.f32 %v175, %v367
    %v560 = vsub.f32 %v176, %v368
    %v561 = vsub.f32 %v177, %v369
    %v562 = vsub.f32 %v178, %v370
    %v563 = vsub.f32 %v179, %v371
    %v564 = vsub.f32 %v180, %v372
    %v565 = vsub.f32 %v181, %v373
    %v566 = vsub.f32 %v182, %v374
    %v567 = vsub.f32 %v183, %v375
    %v568 = vsub.f32 %v184, %v376
    %v569 = vsub.f32 %v185, %v377
    %v570 = vsub.f32 %v186, %v378
    %v571 = vsub.f32 %v187, %v379
    %v572 = vsub.f32 %v188, %v380
    %v573 = vsub.f32 %v189, %v381
    %v574 = vsub.f32 %v190, %v382
    %v575 = vsub.f32 %v191, %v383
    %v576 = vsub.f32 %v192, %v384
    %v577 = vsub.f32 %v193, %v385
    %v578 = vsub.f32 %v194, %v386
    %v579 = vsub.f32 %v195, %v387
    %v580 = vsub.f32 %v196, %v388
    %v581 = vsub.f32 %v197, %v389
    %v582 = vsub.f32 %v198, %v390
    %v583 = vsub.f32 %v199, %v391
    %v584 = vsub.f32 %v200, %v392
    %v585 = vsub.f32 %v201, %v393
    %v586 = vsub.f32 %v202, %v394
    %v587 = vsub.f32 %v203, %v395
    %v588 = vsub.f32 %v204, %v396
    %v589 = vsub.f32 %v205, %v397
    %v590 = vsub.f32 %v206, %v398
    %v591 = vsub.f32 %v207, %v399
    %v592 = vsub.f32 %v208, %v400
    %v593 = vsub.f32 %v209, %v401
    %v594 = vsub.f32 %v210, %v402
    %v595 = vsub.f32 %v211, %v403
    %v596 = vsub.f32 %v212, %v404
    %v597 = vsub.f32 %v213, %v405
    %v598 = vsub.f32 %v214, %v406
    %v599 = vsub.f32 %v215, %v407
    %v600 = vsub.f32 %v216, %v408
    %v601 = vsub.f32 %v217, %v409
    %v602 = vsub.f32 %v218, %v410
    %v603 = vsub.f32 %v219, %v411
    %v604 = vsub.f32 %v220, %v412
    %v605 = vsub.f32 %v221, %v413
    %v606 = vsub.f32 %v222, %v414
    %v607 = vsub.f32 %v223, %v415
    %v608 = vsub.f32 %v224, %v416
    %v609 = vsub.f32 %v225, %v417
    %v610 = vsub.f32 %v226, %v418
    %v611 = vsub.f32 %v227, %v419
    %v612 = vsub.f32 %v228, %v420
    %v613 = vsub.f32 %v229, %v421
    %v614 = vsub.f32 %v230, %v422
    %v615 = vsub.f32 %v231, %v423
    %v616 = vsub.f32 %v232, %v424
    %v617 = vsub.f32 %v233, %v425
    %v618 = vsub.f32 %v234, %v426
    %v619 = vsub.f32 %v235, %v427
    %v620 = vsub.f32 %v236, %v428
    %v621 = vmul.f32 %v429, %v429
    %v622 = vmul.f32 %v430, %v430
    %v623 = vmul.f32 %v431, %v431
    %v624 = vmul.f32 %v432, %v432
    %v625 = vmul.f32 %v433, %v433
    %v626 = vmul.f32 %v434, %v434
    %v627 = vmul.f32 %v435, %v435
    %v628 = vmul.f32 %v436, %v436
    %v629 = vmul.f32 %v437, %v437
    %v630 = vmul.f32 %v438, %v438
    %v631 = vmul.f32 %v439, %v439
    %v632 = vmul.f32 %v440, %v440
    %v633 = vmul.f32 %v441, %v441
    %v634 = vmul.f32 %v442, %v442
    %v635 = vmul.f32 %v443, %v443
    %v636 = vmul.f32 %v444, %v444
    %v637 = vmul.f32 %v445, %v445
    %v638 = vmul.f32 %v446, %v446
    %v639 = vmul.f32 %v447, %v447
    %v640 = vmul.f32 %v448, %v448
    %v641 = vmul.f32 %v449, %v449
    %v642 = vmul.f32 %v450, %v450
    %v643 = vmul.f32 %v451, %v451
    %v644 = vmul.f32 %v452, %v452
    %v645 = vmul.f32 %v453, %v453
    %v646 = vmul.f32 %v454, %v454
    %v647 = vmul.f32 %v455, %v455
    %v648 = vmul.f32 %v456, %v456
    %v649 = vmul.f32 %v457, %v457
    %v650 = vmul.f32 %v458, %v458
    %v651 = vmul.f32 %v459, %v459
    %v652 = vmul.f32 %v460, %v460
    %v653 = vmul.f32 %v461, %v461
    %v654 = vmul.f32 %v462, %v462
    %v655 = vmul.f32 %v463, %v463
    %v656 = vmul.f32 %v464, %v464
    %v657 = vmul.f32 %v465, %v465
    %v658 = vmul.f32 %v466, %v466
    %v659 = vmul.f32 %v467, %v467
    %v660 = vmul.f32 %v468, %v468
    %v661 = vmul.f32 %v469, %v469
    %v662 = vmul.f32 %v470, %v470
    %v663 = vmul.f32 %v471, %v471
    %v664 = vmul.f32 %v472, %v472
    %v665 = vmul.f32 %v473, %v473
    %v666 = vmul.f32 %v474, %v474
    %v667 = vmul.f32 %v475, %v475
    %v668 = vmul.f32 %v476, %v476
    %v669 = vmul.f32 %v477, %v477
    %v670 = vmul.f32 %v478, %v478
    %v671 = vmul.f32 %v479, %v479
    %v672 = vmul.f32 %v480, %v480
    %v673 = vmul.f32 %v481, %v481
    %v674 = vmul.f32 %v482, %v482
    %v675 = vmul.f32 %v483, %v483
    %v676 = vmul.f32 %v484, %v484
    %v677 = vmul.f32 %v485, %v485
    %v678 = vmul.f32 %v486, %v486
    %v679 = vmul.f32 %v487, %v487
    %v680 = vmul.f32 %v488, %v488
    %v681 = vmul.f32 %v489, %v489
    %v682 = vmul.f32 %v490, %v490
    %v683 = vmul.f32 %v491, %v491
    %v684 = vmul.f32 %v492, %v492
    %v685 = vmul.f32 %v493, %v493
    %v686 = vmul.f32 %v494, %v494
    %v687 = vmul.f32 %v495, %v495
    %v688 = vmul.f32 %v496, %v496
    %v689 = vmul.f32 %v497, %v497
    %v690 = vmul.f32 %v498, %v498
    %v691 = vmul.f32 %v499, %v499
    %v692 = vmul.f32 %v500, %v500
    %v693 = vmul.f32 %v501, %v501
    %v694 = vmul.f32 %v502, %v502
    %v695 = vmul.f32 %v503, %v503
    %v696 = vmul.f32 %v504, %v504
    %v697 = vmul.f32 %v505, %v505
    %v698 = vmul.f32 %v506, %v506
    %v699 = vmul.f32 %v507, %v507
    %v700 = vmul.f32 %v508, %v508
    %v701 = vmul.f32 %v509, %v509
    %v702 = vmul.f32 %v510, %v510
    %v703 = vmul.f32 %v511, %v511
    %v704 = vmul.f32 %v512, %v512
    %v705 = vmul.f32 %v513, %v513
    %v706 = vmul.f32 %v514, %v514
    %v707 = vmul.f32 %v515, %v515
    %v708 = vmul.f32 %v516, %v516
    %v709 = vmul.f32 %v517, %v517
    %v710 = vmul.f32 %v518, %v518
    %v711 = vmul.f32 %v519, %v519
    %v712 = vmul.f32 %v520, %v520
    %v713 = vmul.f32 %v521, %v521
    %v714 = vmul.f32 %v522, %v522
    %v715 = vmul.f32 %v523, %v523
    %v716 = vmul.f32 %v524, %v524
    %v717 = vmul.f32 %v525, %v525
    %v718 = vmul.f32 %v526, %v526
    %v719 = vmul.f32 %v527, %v527
    %v720 = vmul.f32 %v528, %v528
    %v721 = vmul.f32 %v529, %v529
    %v722 = vmul.f32 %v530, %v530
    %v723 = vmul.f32 %v531, %v531
    %v724 = vmul.f32 %v532, %v532
    %v725 = vmul.f32 %v533, %v533
    %v726 = vmul.f32 %v534, %v534
    %v727 = vmul.f32 %v535, %v535
    %v728 = vmul.f32 %v536, %v536
    %v729 = vmul.f32 %v537, %v537
    %v730 = vmul.f32 %v538, %v538
    %v731 = vmul.f32 %v539, %v539
    %v732 = vmul.f32 %v540, %v540
    %v733 = vmul.f32 %v541, %v541
    %v734 = vmul.f32 %v542, %v542
    %v735 = vmul.f32 %v543, %v543
    %v736 = vmul.f32 %v544, %v544
    %v737 = vmul.f32 %v545, %v545
    %v738 = vmul.f32 %v546, %v546
    %v739 = vmul.f32 %v547, %v547
    %v740 = vmul.f32 %v548, %v548
    %v741 = vmul.f32 %v549, %v549
    %v742 = vmul.f32 %v550, %v550
    %v743 = vmul.f32 %v551, %v551
    %v744 = vmul.f32 %v552, %v552
    %v745 = vmul.f32 %v553, %v553
    %v746 = vmul.f32 %v554, %v554
    %v747 = vmul.f32 %v555, %v555
    %v748 = vmul.f32 %v556, %v556
    %v749 = vmul.f32 %v557, %v557
    %v750 = vmul.f32 %v558, %v558
    %v751 = vmul.f32 %v559, %v559
    %v752 = vmul.f32 %v560, %v560
    %v753 = vmul.f32 %v561, %v561
    %v754 = vmul.f32 %v562, %v562
    %v755 = vmul.f32 %v563, %v563
    %v756 = vmul.f32 %v564, %v564
    %v757 = vmul.f32 %v565, %v565
    %v758 = vmul.f32 %v566, %v566
    %v759 = vmul.f32 %v567, %v567
    %v760 = vmul.f32 %v568, %v568
    %v761 = vmul.f32 %v569, %v569
    %v762 = vmul.f32 %v570, %v570
    %v763 = vmul.f32 %v571, %v571
    %v764 = vmul.f32 %v572, %v572
    %v765 = vmul.f32 %v573, %v573
    %v766 = vmul.f32 %v574, %v574
    %v767 = vmul.f32 %v575, %v575
    %v768 = vmul.f32 %v576, %v576
    %v769 = vmul.f32 %v577, %v577
    %v770 = vmul.f32 %v578, %v578
    %v771 = vmul.f32 %v579, %v579
    %v772 = vmul.f32 %v580, %v580
    %v773 = vmul.f32 %v581, %v581
    %v774 = vmul.f32 %v582, %v582
    %v775 = vmul.f32 %v583, %v583
    %v776 = vmul.f32 %v584, %v584
    %v777 = vmul.f32 %v585, %v585
    %v778 = vmul.f32 %v586, %v586
    %v779 = vmul.f32 %v587, %v587
    %v780 = vmul.f32 %v588, %v588
    %v781 = vmul.f32 %v589, %v589
    %v782 = vmul.f32 %v590, %v590
    %v783 = vmul.f32 %v591, %v591
    %v784 = vmul.f32 %v592, %v592
    %v785 = vmul.f32 %v593, %v593
    %v786 = vmul.f32 %v594, %v594
    %v787 = vmul.f32 %v595, %v595
    %v788 = vmul.f32 %v596, %v596
    %v789 = vmul.f32 %v597, %v597
    %v790 = vmul.f32 %v598, %v598
    %v791 = vmul.f32 %v599, %v599
    %v792 = vmul.f32 %v600, %v600
    %v793 = vmul.f32 %v601, %v601
    %v794 = vmul.f32 %v602, %v602
    %v795 = vmul.f32 %v603, %v603
    %v796 = vmul.f32 %v604, %v604
    %v797 = vmul.f32 %v605, %v605
    %v798 = vmul.f32 %v606, %v606
    %v799 = vmul.f32 %v607, %v607
    %v800 = vmul.f32 %v608, %v608
    %v801 = vmul.f32 %v609, %v609
    %v802 = vmul.f32 %v610, %v610
    %v803 = vmul.f32 %v611, %v611
    %v804 = vmul.f32 %v612, %v612
    %v805 = vmul.f32 %v613, %v613
    %v806 = vmul.f32 %v614, %v614
    %v807 = vmul.f32 %v615, %v615
    %v808 = vmul.f32 %v616, %v616
    %v809 = vmul.f32 %v617, %v617
    %v810 = vmul.f32 %v618, %v618
    %v811 = vmul.f32 %v619, %v619
    %v812 = vmul.f32 %v620, %v620
    %v813 = vld [vmem:[#allocation7] sm:$0x1]
    %v814 = vadd.f32 %v621, %v622
    %v815 = vadd.f32 %v814, %v623
    %v816 = vadd.f32 %v815, %v624
    %v817 = vadd.f32 %v816, %v625
    %v818 = vadd.f32 %v817, %v626
    %v819 = vadd.f32 %v818, %v627
    %v820 = vadd.f32 %v819, %v628
    %v821 = vadd.f32 %v820, %v629
    %v822 = vadd.f32 %v821, %v630
    %v823 = vadd.f32 %v822, %v631
    %v824 = vadd.f32 %v823, %v632
    %v825 = vadd.f32 %v824, %v633
    %v826 = vadd.f32 %v825, %v634
    %v827 = vadd.f32 %v826, %v635
    %v828 = vadd.f32 %v827, %v636
    %v829 = vadd.f32 %v828, %v637
    %v830 = vadd.f32 %v829, %v638
    %v831 = vadd.f32 %v830, %v639
    %v832 = vadd.f32 %v831, %v640
    %v833 = vadd.f32 %v832, %v641
    %v834 = vadd.f32 %v833, %v642
    %v835 = vadd.f32 %v834, %v643
    %v836 = vadd.f32 %v835, %v644
    %v837 = vadd.f32 %v836, %v645
    %v838 = vadd.f32 %v837, %v646
    %v839 = vadd.f32 %v838, %v647
    %v840 = vadd.f32 %v839, %v648
    %v841 = vadd.f32 %v840, %v649
    %v842 = vadd.f32 %v841, %v650
    %v843 = vadd.f32 %v842, %v651
    %v844 = vadd.f32 %v843, %v652
    %v845 = vadd.f32 %v844, %v653
    %v846 = vadd.f32 %v845, %v654
    %v847 = vadd.f32 %v846, %v655
    %v848 = vadd.f32 %v847, %v656
    %v849 = vadd.f32 %v848, %v657
    %v850 = vadd.f32 %v849, %v658
    %v851 = vadd.f32 %v850, %v659
    %v852 = vadd.f32 %v851, %v660
    %v853 = vadd.f32 %v852, %v661
    %v854 = vadd.f32 %v853, %v662
    %v855 = vadd.f32 %v854, %v663
    %v856 = vadd.f32 %v855, %v664
    %v857 = vadd.f32 %v856, %v665
    %v858 = vadd.f32 %v857, %v666
    %v859 = vadd.f32 %v858, %v667
    %v860 = vadd.f32 %v859, %v668
    %v861 = vadd.f32 %v860, %v669
    %v862 = vadd.f32 %v861, %v670
    %v863 = vadd.f32 %v862, %v671
    %v864 = vadd.f32 %v863, %v672
    %v865 = vadd.f32 %v864, %v673
    %v866 = vadd.f32 %v865, %v674
    %v867 = vadd.f32 %v866, %v675
    %v868 = vadd.f32 %v867, %v676
    %v869 = vadd.f32 %v868, %v677
    %v870 = vadd.f32 %v869, %v678
    %v871 = vadd.f32 %v870, %v679
    %v872 = vadd.f32 %v871, %v680
    %v873 = vadd.f32 %v872, %v681
    %v874 = vadd.f32 %v873, %v682
    %v875 = vadd.f32 %v874, %v683
    %v876 = vadd.f32 %v875, %v684
    %v877 = vadd.f32 %v876, %v685
    %v878 = vadd.f32 %v877, %v686
    %v879 = vadd.f32 %v878, %v687
    %v880 = vadd.f32 %v879, %v688
    %v881 = vadd.f32 %v880, %v689
    %v882 = vadd.f32 %v881, %v690
    %v883 = vadd.f32 %v882, %v691
    %v884 = vadd.f32 %v883, %v692
    %v885 = vadd.f32 %v884, %v693
    %v886 = vadd.f32 %v885, %v694
    %v887 = vadd.f32 %v886, %v695
    %v888 = vadd.f32 %v887, %v696
    %v889 = vadd.f32 %v888, %v697
    %v890 = vadd.f32 %v889, %v698
    %v891 = vadd.f32 %v890, %v699
    %v892 = vadd.f32 %v891, %v700
    %v893 = vadd.f32 %v892, %v701
    %v894 = vadd.f32 %v893, %v702
    %v895 = vadd.f32 %v894, %v703
    %v896 = vadd.f32 %v895, %v704
    %v897 = vadd.f32 %v896, %v705
    %v898 = vadd.f32 %v897, %v706
    %v899 = vadd.f32 %v898, %v707
    %v900 = vadd.f32 %v899, %v708
    %v901 = vadd.f32 %v900, %v709
    %v902 = vadd.f32 %v901, %v710
    %v903 = vadd.f32 %v902, %v711
    %v904 = vadd.f32 %v903, %v712
    %v905 = vadd.f32 %v904, %v713
    %v906 = vadd.f32 %v905, %v714
    %v907 = vadd.f32 %v906, %v715
    %v908 = vadd.f32 %v907, %v716
    %v909 = vadd.f32 %v908, %v717
    %v910 = vadd.f32 %v909, %v718
    %v911 = vadd.f32 %v910, %v719
    %v912 = vadd.f32 %v911, %v720
    %v913 = vadd.f32 %v912, %v721
    %v914 = vadd.f32 %v913, %v722
    %v915 = vadd.f32 %v914, %v723
    %v916 = vadd.f32 %v915, %v724
    %v917 = vadd.f32 %v916, %v725
    %v918 = vadd.f32 %v917, %v726
    %v919 = vadd.f32 %v918, %v727
    %v920 = vadd.f32 %v919, %v728
    %v921 = vadd.f32 %v920, %v729
    %v922 = vadd.f32 %v921, %v730
    %v923 = vadd.f32 %v922, %v731
    %v924 = vadd.f32 %v923, %v732
    %v925 = vadd.f32 %v924, %v733
    %v926 = vadd.f32 %v925, %v734
    %v927 = vadd.f32 %v926, %v735
    %v928 = vadd.f32 %v927, %v736
    %v929 = vadd.f32 %v928, %v737
    %v930 = vadd.f32 %v929, %v738
    %v931 = vadd.f32 %v930, %v739
    %v932 = vadd.f32 %v931, %v740
    %v933 = vadd.f32 %v932, %v741
    %v934 = vadd.f32 %v933, %v742
    %v935 = vadd.f32 %v934, %v743
    %v936 = vadd.f32 %v935, %v744
    %v937 = vadd.f32 %v936, %v745
    %v938 = vadd.f32 %v937, %v746
    %v939 = vadd.f32 %v938, %v747
    %v940 = vadd.f32 %v939, %v748
    %v941 = vadd.f32 %v940, %v749
    %v942 = vadd.f32 %v941, %v750
    %v943 = vadd.f32 %v942, %v751
    %v944 = vadd.f32 %v943, %v752
    %v945 = vadd.f32 %v944, %v753
    %v946 = vadd.f32 %v945, %v754
    %v947 = vadd.f32 %v946, %v755
    %v948 = vadd.f32 %v947, %v756
    %v949 = vadd.f32 %v948, %v757
    %v950 = vadd.f32 %v949, %v758
    %v951 = vadd.f32 %v950, %v759
    %v952 = vadd.f32 %v951, %v760
    %v953 = vadd.f32 %v952, %v761
    %v954 = vadd.f32 %v953, %v762
    %v955 = vadd.f32 %v954, %v763
    %v956 = vadd.f32 %v955, %v764
    %v957 = vadd.f32 %v956, %v765
    %v958 = vadd.f32 %v957, %v766
    %v959 = vadd.f32 %v958, %v767
    %v960 = vadd.f32 %v959, %v768
    %v961 = vadd.f32 %v960, %v769
    %v962 = vadd.f32 %v961, %v770
    %v963 = vadd.f32 %v962, %v771
    %v964 = vadd.f32 %v963, %v772
    %v965 = vadd.f32 %v964, %v773
    %v966 = vadd.f32 %v965, %v774
    %v967 = vadd.f32 %v966, %v775
    %v968 = vadd.f32 %v967, %v776
    %v969 = vadd.f32 %v968, %v777
    %v970 = vadd.f32 %v969, %v778
    %v971 = vadd.f32 %v970, %v779
    %v972 = vadd.f32 %v971, %v780
    %v973 = vadd.f32 %v972, %v781
    %v974 = vadd.f32 %v973, %v782
    %v975 = vadd.f32 %v974, %v783
    %v976 = vadd.f32 %v975, %v784
    %v977 = vadd.f32 %v976, %v785
    %v978 = vadd.f32 %v977, %v786
    %v979 = vadd.f32 %v978, %v787
    %v980 = vadd.f32 %v979, %v788
    %v981 = vadd.f32 %v980, %v789
    %v982 = vadd.f32 %v981, %v790
    %v983 = vadd.f32 %v982, %v791
    %v984 = vadd.f32 %v983, %v792
    %v985 = vadd.f32 %v984, %v793
    %v986 = vadd.f32 %v985, %v794
    %v987 = vadd.f32 %v986, %v795
    %v988 = vadd.f32 %v987, %v796
    %v989 = vadd.f32 %v988, %v797
    %v990 = vadd.f32 %v989, %v798
    %v991 = vadd.f32 %v990, %v799
    %v992 = vadd.f32 %v991, %v800
    %v993 = vadd.f32 %v992, %v801
    %v994 = vadd.f32 %v993, %v802
    %v995 = vadd.f32 %v994, %v803
    %v996 = vadd.f32 %v995, %v804
    %v997 = vadd.f32 %v996, %v805
    %v998 = vadd.f32 %v997, %v806
    %v999 = vadd.f32 %v998, %v807
    %v1000 = vadd.f32 %v999, %v808
    %v1001 = vadd.f32 %v1000, %v809
    %v1002 = vadd.f32 %v1001, %v810
    %v1003 = vadd.f32 %v1002, %v811
    %v1004 = vadd.f32 %v1003, %v812
    %v1005 = vrot.slane %v1004, 4
    %v1006 = vadd.f32 %v1004, %v1005
    %v1007 = vrot.slane %v1006, 2
    %v1008 = vadd.f32 %v1006, %v1007
    %v1009 = vrot.slane %v1008, 1
    %v1010 = vadd.f32 %v1008, %v1009
    %v1011 = vadd.f32 %v813, %v1010
    %1012 = vst [vmem:[#allocation7] sm:$0x1] %v1011
    // Predicated region
    $region22: #{tpu_custom_call.1} parent=1 // pred_check
      _
    $region23: #{tpu_custom_call.1} parent=1 // pred_check_branch
      %1014 = sbr.rel (0) target = $region25
    $region24: #{tpu_custom_call.1} parent=1 // pred_region
      %s1016 = ssub.s32 16, 16
      %1017 = vsyncadd [#allocation4], %s1016
      %s1019 = sshll.u32 [#allocation7], 4
      %s1020 = int_to_ptr.vmem [resolvable:$true] %s1019
      %1022 = dma.vmem_to_hbm [thread:$0]  %s1020, 16, %s2, [#allocation4]
    $region25: #{tpu_custom_call.1} parent=1 // pred_fallthru
      _
    // Predicated region
    $region26: #{tpu_custom_call.1} parent=1 // pred_check
      _
    $region27: #{tpu_custom_call.1} parent=1 // pred_check_branch
      %1024 = sbr.rel (0) target = $region29
    $region28: #{tpu_custom_call.1} parent=1 // pred_region
      %1025 = dma.done [#allocation4], 16
    $region29: #{tpu_custom_call.1} parent=1 // pred_fallthru
      _
    %1026 = vsyncpa [#allocation3], 1
    %1027 = vsyncpa [#allocation6], 1
    %1028 = vsyncpa [#allocation4], 1

</llo_original>
